<compile_context>
chip_gen: v6e
topology: v6e:2x2x1
jax: 0.10.0
libtpu: 0.0.40
codegen_flags: <defaults>
</compile_context>

<pallas_src>
import functools

import jax
import jax.numpy as jnp
from jax import lax
from jax.experimental import pallas as pl
from jax.experimental.pallas import tpu as pltpu


def _hash_uniform_rows(seed_u32, ctr_u32):
    """Light stateless mixer (2 multiply rounds) -> uniform in (0, 1), f32."""
    x = ctr_u32 * jnp.uint32(0x9E3779B9) + seed_u32
    x = x ^ (x >> 16)
    x = x * jnp.uint32(0x7FEB352D)
    x = x ^ (x >> 15)
    # High 23 bits -> (0, 1) exclusive (never exactly 0 or 1).
    return ((x >> 9).astype(jnp.float32) + 0.5) * (1.0 / float(1 << 23))


def actor_categorical_kernel(seed_ref, x_ref, w1_ref, b1_ref, w2_ref, b2_ref,
                             tri_ref, out_ref):
    tb = x_ref.shape[0]
    n_act = w2_ref.shape[1]

    # ---- actor_net: logits = tanh(x @ W1 + b1) @ W2 + b2 --------------------
    x = x_ref[...]
    h = jnp.tanh(
        jnp.dot(x, w1_ref[...], preferred_element_type=jnp.float32) + b1_ref[...]
    )
    logits = (
        jnp.dot(h, w2_ref[...], preferred_element_type=jnp.float32) + b2_ref[...]
    )

    # ---- Categorical(logits): stable softmax pieces, reused everywhere ------
    m = jnp.max(logits, axis=-1, keepdims=True)
    p = jnp.exp(logits - m)                       # unnormalized probabilities
    s = jnp.sum(p, axis=-1, keepdims=True)
    lse = m + jnp.log(s)                          # one log per row (not per logit)

    # ---- pi.sample(): inverse-CDF reusing p and s ----------------------------
    # TODO(synk): cannot bit-match torch.distributions' RNG stream; sampling is
    # distributionally exact inverse-CDF over the same logits.
    pid = pl.program_id(0)
    row = lax.broadcasted_iota(jnp.int32, (tb, 1), 0)
    ctr = (pid * tb).astype(jnp.uint32) + row.astype(jnp.uint32)   # per-row counter
    u = _hash_uniform_rows(seed_ref[0].astype(jnp.uint32), ctr)    # (tb, 1)

    # Inclusive lane cumsum via a tiny upper-triangular matmul (MXU has slack).
    cum = jnp.dot(p, tri_ref[...], preferred_element_type=jnp.float32)
    thresh = u * s
    idx = jnp.sum((cum < thresh).astype(jnp.int32), axis=-1, keepdims=True)
    idx = jnp.minimum(idx, n_act - 1)             # guard fp edge at u ~ 1

    # ---- extras the PPO loop consumes: log_prob(action), entropy -------------
    col = lax.broadcasted_iota(jnp.int32, (tb, n_act), 1)
    sel = jnp.sum(jnp.where(col == idx, logits, 0.0), axis=-1, keepdims=True)
    lp_a = sel - lse
    ent = lse - jnp.sum(p * logits, axis=-1, keepdims=True) / s

    # ---- single lane-packed output slab (one DMA stream per grid step) -------
    out_ref[:, :n_act] = logits
    out_ref[:, n_act:n_act + 1] = lse
    out_ref[:, n_act + 1:n_act + 2] = idx.astype(jnp.float32)
    out_ref[:, n_act + 2:n_act + 3] = lp_a
    out_ref[:, n_act + 3:n_act + 4] = ent


@functools.partial(jax.jit, static_argnames=("block_b",))
def actor_categorical_forward(states, params, seed, *, block_b=None):
    """Returns (logits, log_probs, actions, log_prob_action, entropy)."""
    w1, b1, w2, b2 = params
    B, OBS = states.shape
    HID = w1.shape[1]
    A = w2.shape[1]
    PACK = A + 4

    # Batch tile: large enough to amortize per-step overhead (footprint is only
    # ~1-2 MiB even at 2048 rows), but capped so the grid has >=2 steps when B
    # allows it, so ("parallel",) shards across both v7x TensorCores.
    if block_b is None:
        block_b = min(B, 2048)
        if B > 8:
            half = (((B + 1) // 2) + 7) // 8 * 8
            block_b = min(block_b, max(8, half))
    block_b = max(8, (block_b // 8) * 8)

    Bp = pl.cdiv(B, block_b) * block_b
    if Bp != B:
        states = jnp.pad(states, ((0, Bp - B), (0, 0)))
    grid = (Bp // block_b,)

    # Upper-triangular ones matrix for the in-kernel inclusive lane cumsum.
    tri = jnp.triu(jnp.ones((A, A), jnp.float32))

    cost = pl.CostEstimate(
        flops=2 * Bp * (OBS * HID + HID * A + A * A),
        transcendentals=Bp * (HID + A + 2),
        bytes_accessed=4 * (Bp * OBS + OBS * HID + HID + HID * A + A + A * A
                            + Bp * PACK),
    )

    packed = pl.pallas_call(
        actor_categorical_kernel,
        out_shape=jax.ShapeDtypeStruct((Bp, PACK), jnp.float32),
        grid_spec=pltpu.PrefetchScalarGridSpec(
            num_scalar_prefetch=1,
            grid=grid,
            in_specs=[
                pl.BlockSpec((block_b, OBS), lambda i, _s: (i, 0)),  # states tile
                pl.BlockSpec((OBS, HID), lambda i, _s: (0, 0)),      # W1 resident
                pl.BlockSpec((1, HID), lambda i, _s: (0, 0)),        # b1 resident
                pl.BlockSpec((HID, A), lambda i, _s: (0, 0)),        # W2 resident
                pl.BlockSpec((1, A), lambda i, _s: (0, 0)),          # b2 resident
                pl.BlockSpec((A, A), lambda i, _s: (0, 0)),          # tri resident
            ],
            out_specs=pl.BlockSpec((block_b, PACK), lambda i, _s: (i, 0)),
        ),
        compiler_params=pltpu.CompilerParams(
            dimension_semantics=("parallel",),   # shard batch over v7x's 2 TCs
        ),
        cost_estimate=cost,
    )(seed, states, w1, b1.reshape(1, -1), w2, b2.reshape(1, -1), tri)

    packed = packed[:B]
    logits = packed[:, :A]
    lse = packed[:, A:A + 1]
    actions = packed[:, A + 1].astype(jnp.int32)
    lp_a = packed[:, A + 2]
    entropy = packed[:, A + 3]
    log_probs = logits - lse                     # Categorical's normalized log-probs
    return logits, log_probs, actions, lp_a, entropy


# ActorCategorical.get_log_prob / .entropy equivalents for arbitrary actions;
# the kernel already returns the fused versions for the sampled actions.
def categorical_log_prob(log_probs, actions):
    return jnp.take_along_axis(log_probs, actions[:, None], axis=-1)[:, 0]


def categorical_entropy(log_probs):
    return -jnp.sum(jnp.exp(log_probs) * log_probs, axis=-1)


def init_params(key, obs_dim, hidden, n_actions):
    """Deterministic PyTorch-Linear-style init: U(-1/sqrt(fan_in), 1/sqrt(fan_in))."""
    k1, k2, k3, k4 = jax.random.split(key, 4)
    s1 = 1.0 / jnp.sqrt(obs_dim)
    s2 = 1.0 / jnp.sqrt(hidden)
    w1 = jax.random.uniform(k1, (obs_dim, hidden), jnp.float32, -s1, s1)
    b1 = jax.random.uniform(k2, (hidden,), jnp.float32, -s1, s1)
    w2 = jax.random.uniform(k3, (hidden, n_actions), jnp.float32, -s2, s2)
    b2 = jax.random.uniform(k4, (n_actions,), jnp.float32, -s2, s2)
    return w1, b1, w2, b2


if __name__ == "__main__":
    B, OBS, HID, ACT = 8, 32, 64, 8

    key = jax.random.PRNGKey(0)
    k_states, k_params = jax.random.split(key)
    states = jax.random.normal(k_states, (B, OBS), jnp.float32)
    params = init_params(k_params, OBS, HID, ACT)
    seed = jnp.array([42], dtype=jnp.int32)

    logits, log_probs, actions, lp_a, entropy = actor_categorical_forward(
        states, params, seed)
    jax.block_until_ready((logits, log_probs, actions, lp_a, entropy))

    # sanity checks against a pure-JAX reference of actor_net / Categorical
    w1, b1, w2, b2 = params
    ref_logits = jnp.tanh(states @ w1 + b1) @ w2 + b2
    ref_logp = jax.nn.log_softmax(ref_logits, axis=-1)
    assert jnp.allclose(logits, ref_logits, atol=1e-3, rtol=1e-3)
    assert jnp.allclose(log_probs, ref_logp, atol=1e-3, rtol=1e-3)
    assert actions.shape == (B,) and actions.dtype == jnp.int32
    assert bool(jnp.all((actions >= 0) & (actions < ACT)))

    # in-kernel log_prob(action) / entropy match the reference distribution
    ref_lp_a = jnp.take_along_axis(ref_logp, actions[:, None], axis=-1)[:, 0]
    ref_ent = -jnp.sum(jnp.exp(ref_logp) * ref_logp, axis=-1)
    assert jnp.allclose(lp_a, ref_lp_a, atol=1e-3, rtol=1e-3)
    assert jnp.allclose(entropy, ref_ent, atol=1e-3, rtol=1e-3)

    # helper methods (get_log_prob / entropy equivalents) are finite & sane
    lp_h = categorical_log_prob(log_probs, actions)
    ent_h = categorical_entropy(log_probs)
    assert bool(jnp.all(lp_h <= 0.0)) and bool(jnp.all(ent_h >= 0.0))

    print("KERNEL_OK")
</pallas_src>

<mosaic_0001>
module attributes {stable_mosaic.version = 11 : i64} {
  func.func @actor_categorical_kernel(%arg0: i32, %arg1: memref<1xi32, #tpu.memory_space<smem>>, %arg2: memref<8x32xf32, #tpu.memory_space<vmem>>, %arg3: memref<32x64xf32, #tpu.memory_space<vmem>>, %arg4: memref<1x64xf32, #tpu.memory_space<vmem>>, %arg5: memref<64x8xf32, #tpu.memory_space<vmem>>, %arg6: memref<1x8xf32, #tpu.memory_space<vmem>>, %arg7: memref<8x8xf32, #tpu.memory_space<vmem>>, %arg8: memref<8x12xf32, #tpu.memory_space<vmem>>) attributes {dimension_semantics = [#tpu.dimension_semantics<parallel>], iteration_bounds = array<i64: 1>, scalar_prefetch = 1 : i64, scratch_operands = 0 : i64, tpu.core_type = #tpu.core_type<tc>, window_params = [{transform_indices = @transform_0, window_bounds = array<i64: 8, 32>}, {pipeline_mode = #tpu.pipeline_mode<synchronous>, transform_indices = @transform_1, window_bounds = array<i64: 32, 64>}, {pipeline_mode = #tpu.pipeline_mode<synchronous>, transform_indices = @transform_2, window_bounds = array<i64: 1, 64>}, {pipeline_mode = #tpu.pipeline_mode<synchronous>, transform_indices = @transform_3, window_bounds = array<i64: 64, 8>}, {pipeline_mode = #tpu.pipeline_mode<synchronous>, transform_indices = @transform_4, window_bounds = array<i64: 1, 8>}, {pipeline_mode = #tpu.pipeline_mode<synchronous>, transform_indices = @transform_5, window_bounds = array<i64: 8, 8>}, {transform_indices = @transform_6, window_bounds = array<i64: 8, 12>}]} {
    %c0 = arith.constant 0 : index
    %c0_0 = arith.constant 0 : index
    %0 = vector.load %arg2[%c0, %c0_0] : memref<8x32xf32, #tpu.memory_space<vmem>>, vector<8x32xf32>
    %c0_1 = arith.constant 0 : index
    %c0_2 = arith.constant 0 : index
    %1 = vector.load %arg3[%c0_1, %c0_2] : memref<32x64xf32, #tpu.memory_space<vmem>>, vector<32x64xf32>
    %cst = arith.constant dense<0.000000e+00> : vector<8x64xf32>
    %2 = tpu.matmul %0, %1, %cst {dimension_numbers = #tpu.dot_dimension_numbers<[1], [0], [0], [1], [0, 0, 1, 1], [], []>} : vector<8x32xf32>, vector<32x64xf32>, vector<8x64xf32> -> vector<8x64xf32>
    %c0_3 = arith.constant 0 : index
    %c0_4 = arith.constant 0 : index
    %3 = vector.load %arg4[%c0_3, %c0_4] : memref<1x64xf32, #tpu.memory_space<vmem>>, vector<1x64xf32>
    %4 = vector.broadcast %3 : vector<1x64xf32> to vector<8x64xf32>
    %5 = arith.addf %2, %4 : vector<8x64xf32>
    %6 = math.tanh %5 : vector<8x64xf32>
    %c0_5 = arith.constant 0 : index
    %c0_6 = arith.constant 0 : index
    %7 = vector.load %arg5[%c0_5, %c0_6] : memref<64x8xf32, #tpu.memory_space<vmem>>, vector<64x8xf32>
    %cst_7 = arith.constant dense<0.000000e+00> : vector<8x8xf32>
    %8 = tpu.matmul %6, %7, %cst_7 {dimension_numbers = #tpu.dot_dimension_numbers<[1], [0], [0], [1], [0, 0, 1, 1], [], []>} : vector<8x64xf32>, vector<64x8xf32>, vector<8x8xf32> -> vector<8x8xf32>
    %c0_8 = arith.constant 0 : index
    %c0_9 = arith.constant 0 : index
    %9 = vector.load %arg6[%c0_8, %c0_9] : memref<1x8xf32, #tpu.memory_space<vmem>>, vector<1x8xf32>
    %10 = vector.broadcast %9 : vector<1x8xf32> to vector<8x8xf32>
    %11 = arith.addf %8, %10 : vector<8x8xf32>
    %cst_10 = arith.constant dense<0xFF800000> : vector<8xf32>
    %12 = vector.multi_reduction <maximumf>, %11, %cst_10 [1] : vector<8x8xf32> to vector<8xf32>
    %13 = vector.shape_cast %12 : vector<8xf32> to vector<8x1xf32>
    %14 = vector.broadcast %13 : vector<8x1xf32> to vector<8x8xf32>
    %15 = arith.subf %11, %14 : vector<8x8xf32>
    %16 = math.exp %15 : vector<8x8xf32>
    %cst_11 = arith.constant dense<0.000000e+00> : vector<8xf32>
    %17 = vector.multi_reduction <add>, %16, %cst_11 [1] : vector<8x8xf32> to vector<8xf32>
    %18 = vector.shape_cast %17 : vector<8xf32> to vector<8x1xf32>
    %19 = math.log %18 : vector<8x1xf32>
    %20 = arith.addf %13, %19 : vector<8x1xf32>
    %21 = tpu.iota {dimensions = array<i32: 0>} : vector<8x1xi32>
    %c8_i32 = arith.constant 8 : i32
    %22 = arith.muli %arg0, %c8_i32 : i32
    %23 = vector.broadcast %22 : i32 to vector<8x1xi32>
    %24 = arith.addi %23, %21 : vector<8x1xi32>
    %c0_12 = arith.constant 0 : index
    %25 = memref.load %arg1[%c0_12] : memref<1xi32, #tpu.memory_space<smem>>
    %c-1640531527_i32 = arith.constant -1640531527 : i32
    %26 = vector.broadcast %c-1640531527_i32 : i32 to vector<8x1xi32>
    %27 = arith.muli %24, %26 : vector<8x1xi32>
    %28 = vector.broadcast %25 : i32 to vector<8x1xi32>
    %29 = arith.addi %27, %28 : vector<8x1xi32>
    %c16_i32 = arith.constant 16 : i32
    %30 = vector.broadcast %c16_i32 : i32 to vector<8x1xi32>
    %31 = arith.shrui %29, %30 : vector<8x1xi32>
    %32 = arith.xori %29, %31 : vector<8x1xi32>
    %c2146121005_i32 = arith.constant 2146121005 : i32
    %33 = vector.broadcast %c2146121005_i32 : i32 to vector<8x1xi32>
    %34 = arith.muli %32, %33 : vector<8x1xi32>
    %c15_i32 = arith.constant 15 : i32
    %35 = vector.broadcast %c15_i32 : i32 to vector<8x1xi32>
    %36 = arith.shrui %34, %35 : vector<8x1xi32>
    %37 = arith.xori %34, %36 : vector<8x1xi32>
    %c9_i32 = arith.constant 9 : i32
    %38 = vector.broadcast %c9_i32 : i32 to vector<8x1xi32>
    %39 = arith.shrui %37, %38 : vector<8x1xi32>
    %40 = arith.uitofp %39 : vector<8x1xi32> to vector<8x1xf32>
    %cst_13 = arith.constant 5.000000e-01 : f32
    %41 = vector.broadcast %cst_13 : f32 to vector<8x1xf32>
    %42 = arith.addf %40, %41 : vector<8x1xf32>
    %cst_14 = arith.constant 1.1920929E-7 : f32
    %43 = vector.broadcast %cst_14 : f32 to vector<8x1xf32>
    %44 = arith.mulf %42, %43 : vector<8x1xf32>
    %c0_15 = arith.constant 0 : index
    %c0_16 = arith.constant 0 : index
    %45 = vector.load %arg7[%c0_15, %c0_16] : memref<8x8xf32, #tpu.memory_space<vmem>>, vector<8x8xf32>
    %cst_17 = arith.constant dense<0.000000e+00> : vector<8x8xf32>
    %46 = tpu.matmul %16, %45, %cst_17 {dimension_numbers = #tpu.dot_dimension_numbers<[1], [0], [0], [1], [0, 0, 1, 1], [], []>} : vector<8x8xf32>, vector<8x8xf32>, vector<8x8xf32> -> vector<8x8xf32>
    %47 = arith.mulf %44, %18 : vector<8x1xf32>
    %48 = vector.broadcast %47 : vector<8x1xf32> to vector<8x8xf32>
    %49 = arith.cmpf olt, %46, %48 : vector<8x8xf32>
    %50 = arith.extui %49 : vector<8x8xi1> to vector<8x8xi32>
    %cst_18 = arith.constant dense<0> : vector<8xi32>
    %51 = vector.multi_reduction <add>, %50, %cst_18 [1] : vector<8x8xi32> to vector<8xi32>
    %52 = vector.shape_cast %51 : vector<8xi32> to vector<8x1xi32>
    %c7_i32 = arith.constant 7 : i32
    %53 = vector.broadcast %c7_i32 : i32 to vector<8x1xi32>
    %54 = arith.minsi %52, %53 : vector<8x1xi32>
    %55 = tpu.iota {dimensions = array<i32: 1>} : vector<8x8xi32>
    %56 = vector.broadcast %54 : vector<8x1xi32> to vector<8x8xi32>
    %57 = arith.cmpi eq, %55, %56 : vector<8x8xi32>
    %cst_19 = arith.constant 0.000000e+00 : f32
    %58 = vector.broadcast %cst_19 : f32 to vector<8x8xf32>
    %59 = arith.select %57, %11, %58 : vector<8x8xi1>, vector<8x8xf32>
    %cst_20 = arith.constant dense<0.000000e+00> : vector<8xf32>
    %60 = vector.multi_reduction <add>, %59, %cst_20 [1] : vector<8x8xf32> to vector<8xf32>
    %61 = vector.shape_cast %60 : vector<8xf32> to vector<8x1xf32>
    %62 = arith.subf %61, %20 : vector<8x1xf32>
    %63 = arith.mulf %16, %11 : vector<8x8xf32>
    %cst_21 = arith.constant dense<0.000000e+00> : vector<8xf32>
    %64 = vector.multi_reduction <add>, %63, %cst_21 [1] : vector<8x8xf32> to vector<8xf32>
    %65 = vector.shape_cast %64 : vector<8xf32> to vector<8x1xf32>
    %66 = arith.divf %65, %18 : vector<8x1xf32>
    %67 = arith.subf %20, %66 : vector<8x1xf32>
    %c0_22 = arith.constant 0 : index
    %c0_23 = arith.constant 0 : index
    %68 = vector.load %arg8[%c0_22, %c0_23] : memref<8x12xf32, #tpu.memory_space<vmem>>, vector<8x8xf32>
    tpu.vector_store %arg8[%c0_22, %c0_23], %11 {strides = array<i32>} : memref<8x12xf32, #tpu.memory_space<vmem>>, vector<8x8xf32>,
    %c0_24 = arith.constant 0 : index
    %c8 = arith.constant 8 : index
    %69 = vector.load %arg8[%c0_24, %c8] : memref<8x12xf32, #tpu.memory_space<vmem>>, vector<8x1xf32>
    tpu.vector_store %arg8[%c0_24, %c8], %20 {strides = array<i32>} : memref<8x12xf32, #tpu.memory_space<vmem>>, vector<8x1xf32>,
    %70 = arith.sitofp %54 : vector<8x1xi32> to vector<8x1xf32>
    %c0_25 = arith.constant 0 : index
    %c9 = arith.constant 9 : index
    %71 = vector.load %arg8[%c0_25, %c9] : memref<8x12xf32, #tpu.memory_space<vmem>>, vector<8x1xf32>
    tpu.vector_store %arg8[%c0_25, %c9], %70 {strides = array<i32>} : memref<8x12xf32, #tpu.memory_space<vmem>>, vector<8x1xf32>,
    %c0_26 = arith.constant 0 : index
    %c10 = arith.constant 10 : index
    %72 = vector.load %arg8[%c0_26, %c10] : memref<8x12xf32, #tpu.memory_space<vmem>>, vector<8x1xf32>
    tpu.vector_store %arg8[%c0_26, %c10], %62 {strides = array<i32>} : memref<8x12xf32, #tpu.memory_space<vmem>>, vector<8x1xf32>,
    %c0_27 = arith.constant 0 : index
    %c11 = arith.constant 11 : index
    %73 = vector.load %arg8[%c0_27, %c11] : memref<8x12xf32, #tpu.memory_space<vmem>>, vector<8x1xf32>
    tpu.vector_store %arg8[%c0_27, %c11], %67 {strides = array<i32>} : memref<8x12xf32, #tpu.memory_space<vmem>>, vector<8x1xf32>,
    return
  }
  func.func @transform_0(%arg0: i32, %arg1: memref<1xi32, #tpu.memory_space<smem>>) -> (i32, i32) {
    %c0_i32 = arith.constant 0 : i32
    %c0_i32_0 = arith.constant 0 : i32
    return %arg0, %c0_i32 : i32, i32
  }
  func.func @transform_1(%arg0: i32, %arg1: memref<1xi32, #tpu.memory_space<smem>>) -> (i32, i32) {
    %c0_i32 = arith.constant 0 : i32
    %c0_i32_0 = arith.constant 0 : i32
    %c0_i32_1 = arith.constant 0 : i32
    return %c0_i32, %c0_i32_0 : i32, i32
  }
  func.func @transform_2(%arg0: i32, %arg1: memref<1xi32, #tpu.memory_space<smem>>) -> (i32, i32) {
    %c0_i32 = arith.constant 0 : i32
    %c0_i32_0 = arith.constant 0 : i32
    %c0_i32_1 = arith.constant 0 : i32
    return %c0_i32, %c0_i32_0 : i32, i32
  }
  func.func @transform_3(%arg0: i32, %arg1: memref<1xi32, #tpu.memory_space<smem>>) -> (i32, i32) {
    %c0_i32 = arith.constant 0 : i32
    %c0_i32_0 = arith.constant 0 : i32
    %c0_i32_1 = arith.constant 0 : i32
    return %c0_i32, %c0_i32_0 : i32, i32
  }
  func.func @transform_4(%arg0: i32, %arg1: memref<1xi32, #tpu.memory_space<smem>>) -> (i32, i32) {
    %c0_i32 = arith.constant 0 : i32
    %c0_i32_0 = arith.constant 0 : i32
    %c0_i32_1 = arith.constant 0 : i32
    return %c0_i32, %c0_i32_0 : i32, i32
  }
  func.func @transform_5(%arg0: i32, %arg1: memref<1xi32, #tpu.memory_space<smem>>) -> (i32, i32) {
    %c0_i32 = arith.constant 0 : i32
    %c0_i32_0 = arith.constant 0 : i32
    %c0_i32_1 = arith.constant 0 : i32
    return %c0_i32, %c0_i32_0 : i32, i32
  }
  func.func @transform_6(%arg0: i32, %arg1: memref<1xi32, #tpu.memory_space<smem>>) -> (i32, i32) {
    %c0_i32 = arith.constant 0 : i32
    %c0_i32_0 = arith.constant 0 : i32
    return %arg0, %c0_i32 : i32, i32
  }
}

</mosaic_0001>

<llo_original>
// kernel: actor_categorical_forward.1
$region0: #{actor_categorical_forward.1}
  #allocation0 [shape = 'u32[]', space=smem, size = 0x4, offset = 0x4, fixed_abs, tag = 'smem constant byte address 0x4 - core index']
  #allocation1 [shape = 'u32[144,128]{1,0:T(1,128)}', space=vmem, size = 0x12000, scoped, tag = 'internal scratch']
  #allocation2 [shape = 's32[1]{0}', space=sflag, size = 0x4, scoped, tag = 'scoped memory for actor_categorical_forward.1']
  #allocation3 [shape = 's32[1]{0:T(128)S(6)}', space=smem, size = 0x200, scoped, tag = 'prefetched SMEM operand 0']
  %s0 = inlined_call_operand.<no memory space> [shape: s32[1], index: 0, kind: input, shape index: {}]
  %s1 = inlined_call_operand.vmem [shape: f32[8,32], index: 1, kind: input, shape index: {}]
  %s2 = inlined_call_operand.vmem [shape: f32[32,64], index: 2, kind: input, shape index: {}]
  %s3 = inlined_call_operand.vmem [shape: f32[1,64], index: 3, kind: input, shape index: {}]
  %s4 = inlined_call_operand.vmem [shape: f32[64,8], index: 4, kind: input, shape index: {}]
  %s5 = inlined_call_operand.vmem [shape: f32[1,8], index: 5, kind: input, shape index: {}]
  %s6 = inlined_call_operand.vmem [shape: f32[8,8], index: 6, kind: input, shape index: {}]
  %s7 = inlined_call_operand.vmem [shape: f32[8,12], index: 7, kind: output, shape index: {}]
  %s8 = sld [smem:[#allocation0]]
  $region34: #{actor_categorical_forward.1} parent=0
    _
  %s10 = ssub.s32 1, %s8
  %s11 = scalar_select 0, %s10, %s8
  %12 = sst [smem:[#allocation3]] %s0
  // Predicated region
  $region2: #{actor_categorical_forward.1} parent=0 // pred_check
    _
  $region3: #{actor_categorical_forward.1} parent=0 // pred_check_branch
    %14 = sbr.rel (0) target = $region5
  $region4: #{actor_categorical_forward.1} parent=0 // pred_region
    _
  $region5: #{actor_categorical_forward.1} parent=0 // pred_fallthru
    _
  // Predicated region
  $region6: #{actor_categorical_forward.1} parent=0 // pred_check
    _
  $region7: #{actor_categorical_forward.1} parent=0 // pred_check_branch
    %16 = sbr.rel (0) target = $region9
  $region8: #{actor_categorical_forward.1} parent=0 // pred_region
    _
  $region9: #{actor_categorical_forward.1} parent=0 // pred_fallthru
    _
  // Predicated region
  $region10: #{actor_categorical_forward.1} parent=0 // pred_check
    _
  $region11: #{actor_categorical_forward.1} parent=0 // pred_check_branch
    %18 = sbr.rel (0) target = $region13
  $region12: #{actor_categorical_forward.1} parent=0 // pred_region
    _
  $region13: #{actor_categorical_forward.1} parent=0 // pred_fallthru
    _
  // Predicated region
  $region14: #{actor_categorical_forward.1} parent=0 // pred_check
    _
  $region15: #{actor_categorical_forward.1} parent=0 // pred_check_branch
    %20 = sbr.rel (0) target = $region17
  $region16: #{actor_categorical_forward.1} parent=0 // pred_region
    _
  $region17: #{actor_categorical_forward.1} parent=0 // pred_fallthru
    _
  // Predicated region
  $region18: #{actor_categorical_forward.1} parent=0 // pred_check
    _
  $region19: #{actor_categorical_forward.1} parent=0 // pred_check_branch
    %22 = sbr.rel (0) target = $region21
  $region20: #{actor_categorical_forward.1} parent=0 // pred_region
    _
  $region21: #{actor_categorical_forward.1} parent=0 // pred_fallthru
    _
  // Predicated region
  $region22: #{actor_categorical_forward.1} parent=0 // pred_check
    _
  $region23: #{actor_categorical_forward.1} parent=0 // pred_check_branch
    %24 = sbr.rel (0) target = $region25
  $region24: #{actor_categorical_forward.1} parent=0 // pred_region
    _
  $region25: #{actor_categorical_forward.1} parent=0 // pred_fallthru
    _
  %v25 = vld [vmem:[%s1] sm:$0xff]
  %v26 = vld [vmem:[%s2] sm:$0xff]
  %v27 = vld [vmem:[%s2 + $0x8] sm:$0xff]
  %v28 = vld [vmem:[%s2 + $0x10] sm:$0xff]
  %v29 = vld [vmem:[%s2 + $0x18] sm:$0xff]
  %v30 = vld [vmem:[%s3] sm:$0x1]
  %v32 = vlaneseq
  %v33 = vshrl.u32 %v32, 7
  %v34 = vsub.s32 0, %v33
  %v35 = vrot.slane %v30, %v34
  %vm37 = vcmask 261120
  %v39 = vsel %vm37, %v25, 0
  %41 = vmatprep.subr.mxu0 0.0
  %42 = vmatpush1.msra.mxu0 0.0
  %43 = vmatprep.subr.mxu0 0.0
  %44 = vmatpush1.msra.mxu0 0.0
  %45 = vmatprep.subr.mxu0 0.0
  %46 = vmatpush1.msra.mxu0 0.0
  %47 = vmatprep.subr.mxu0 0.0
  %48 = vmatpush1.msra.mxu0 0.0
  %49 = vmatprep.subr.mxu0 0.0
  %50 = vmatpush1.msra.mxu0 0.0
  %51 = vmatprep.subr.mxu0 0.0
  %52 = vmatpush1.msra.mxu0 0.0
  %53 = vmatprep.subr.mxu0 0.0
  %54 = vmatpush1.msra.mxu0 0.0
  %55 = vmatprep.subr.mxu0 0.0
  %56 = vmatpush1.msra.mxu0 0.0
  %57 = vmatprep.subr.mxu0 0.0
  %58 = vmatpush1.msra.mxu0 0.0
  %59 = vmatprep.subr.mxu0 0.0
  %60 = vmatpush1.msra.mxu0 0.0
  %61 = vmatprep.subr.mxu0 0.0
  %62 = vmatpush1.msra.mxu0 0.0
  %63 = vmatprep.subr.mxu0 0.0
  %64 = vmatpush1.msra.mxu0 0.0
  %65 = vmatprep.subr.mxu0 0.0
  %66 = vmatpush1.msra.mxu0 %v29
  %67 = vmatprep.subr.mxu0 0.0
  %68 = vmatpush1.msra.mxu0 %v28
  %69 = vmatprep.subr.mxu0 0.0
  %70 = vmatpush1.msra.mxu0 %v27
  %71 = vmatprep.subr.mxu0 0.0
  %72 = vmatpush1.msra.mxu0 %v26
  %73 = vmatprep.subr.mxu0 0.0
  %74 = vmatpush2.msra.mxu0 0.0
  %75 = vmatprep.subr.mxu0 0.0
  %76 = vmatpush2.msra.mxu0 0.0
  %77 = vmatprep.subr.mxu0 0.0
  %78 = vmatpush2.msra.mxu0 0.0
  %79 = vmatprep.subr.mxu0 0.0
  %80 = vmatpush2.msra.mxu0 0.0
  %81 = vmatprep.subr.mxu0 0.0
  %82 = vmatpush2.msra.mxu0 0.0
  %83 = vmatprep.subr.mxu0 0.0
  %84 = vmatpush2.msra.mxu0 0.0
  %85 = vmatprep.subr.mxu0 0.0
  %86 = vmatpush2.msra.mxu0 0.0
  %87 = vmatprep.subr.mxu0 0.0
  %88 = vmatpush2.msra.mxu0 0.0
  %89 = vmatprep.subr.mxu0 0.0
  %90 = vmatpush2.msra.mxu0 0.0
  %91 = vmatprep.subr.mxu0 0.0
  %92 = vmatpush2.msra.mxu0 0.0
  %93 = vmatprep.subr.mxu0 0.0
  %94 = vmatpush2.msra.mxu0 0.0
  %95 = vmatprep.subr.mxu0 0.0
  %96 = vmatpush2.msra.mxu0 0.0
  %97 = vmatprep.subr.mxu0 0.0
  %98 = vmatpush2.msra.mxu0 0.0
  %99 = vmatprep.subr.mxu0 0.0
  %100 = vmatpush2.msra.mxu0 0.0
  %101 = vmatprep.subr.mxu0 0.0
  %102 = vmatpush2.msra.mxu0 0.0
  %103 = vmatprep.subr.mxu0 0.0
  %104 = vmatpush2.msra.mxu0 0.0
  %105 = vmatprep.mubr.f32.mxu0 0.0
  %106 = vmatmul.mubr.f32.gmra.mxu0 %v39
  %v107 = vpop.f32.mrf.mxu0
  %v108 = vadd.f32 %v35, %v107
  %v109 = vpop.f32.mrf.mxu0
  %110 = vdwg.mxu0
  %v111 = vtanh.pop %v108
  %v112 = vld [vmem:[%s4] sm:$0xff]
  %v113 = vld [vmem:[%s4 + $0x8] sm:$0xff]
  %v114 = vld [vmem:[%s4 + $0x10] sm:$0xff]
  %v115 = vld [vmem:[%s4 + $0x18] sm:$0xff]
  %v116 = vld [vmem:[%s4 + $0x20] sm:$0xff]
  %v117 = vld [vmem:[%s4 + $0x28] sm:$0xff]
  %v118 = vld [vmem:[%s4 + $0x30] sm:$0xff]
  %v119 = vld [vmem:[%s4 + $0x38] sm:$0xff]
  %v120 = vld [vmem:[%s5] sm:$0x1]
  %v122 = vlaneseq
  %v123 = vshrl.u32 %v122, 7
  %v124 = vsub.s32 0, %v123
  %v125 = vrot.slane %v120, %v124
  %vm127 = vcmask 523264
  %v129 = vsel %vm127, %v111, 0
  %131 = vmatprep.subr.mxu0 0.0
  %132 = vmatpush1.msra.mxu0 0.0
  %133 = vmatprep.subr.mxu0 0.0
  %134 = vmatpush1.msra.mxu0 0.0
  %135 = vmatprep.subr.mxu0 0.0
  %136 = vmatpush1.msra.mxu0 0.0
  %137 = vmatprep.subr.mxu0 0.0
  %138 = vmatpush1.msra.mxu0 0.0
  %139 = vmatprep.subr.mxu0 0.0
  %140 = vmatpush1.msra.mxu0 0.0
  %141 = vmatprep.subr.mxu0 0.0
  %142 = vmatpush1.msra.mxu0 0.0
  %143 = vmatprep.subr.mxu0 0.0
  %144 = vmatpush1.msra.mxu0 0.0
  %145 = vmatprep.subr.mxu0 0.0
  %146 = vmatpush1.msra.mxu0 0.0
  %147 = vmatprep.subr.mxu0 0.0
  %148 = vmatpush1.msra.mxu0 %v119
  %149 = vmatprep.subr.mxu0 0.0
  %150 = vmatpush1.msra.mxu0 %v118
  %151 = vmatprep.subr.mxu0 0.0
  %152 = vmatpush1.msra.mxu0 %v117
  %153 = vmatprep.subr.mxu0 0.0
  %154 = vmatpush1.msra.mxu0 %v116
  %155 = vmatprep.subr.mxu0 0.0
  %156 = vmatpush1.msra.mxu0 %v115
  %157 = vmatprep.subr.mxu0 0.0
  %158 = vmatpush1.msra.mxu0 %v114
  %159 = vmatprep.subr.mxu0 0.0
  %160 = vmatpush1.msra.mxu0 %v113
  %161 = vmatprep.subr.mxu0 0.0
  %162 = vmatpush1.msra.mxu0 %v112
  %163 = vmatprep.subr.mxu0 0.0
  %164 = vmatpush2.msra.mxu0 0.0
  %165 = vmatprep.subr.mxu0 0.0
  %166 = vmatpush2.msra.mxu0 0.0
  %167 = vmatprep.subr.mxu0 0.0
  %168 = vmatpush2.msra.mxu0 0.0
  %169 = vmatprep.subr.mxu0 0.0
  %170 = vmatpush2.msra.mxu0 0.0
  %171 = vmatprep.subr.mxu0 0.0
  %172 = vmatpush2.msra.mxu0 0.0
  %173 = vmatprep.subr.mxu0 0.0
  %174 = vmatpush2.msra.mxu0 0.0
  %175 = vmatprep.subr.mxu0 0.0
  %176 = vmatpush2.msra.mxu0 0.0
  %177 = vmatprep.subr.mxu0 0.0
  %178 = vmatpush2.msra.mxu0 0.0
  %179 = vmatprep.subr.mxu0 0.0
  %180 = vmatpush2.msra.mxu0 0.0
  %181 = vmatprep.subr.mxu0 0.0
  %182 = vmatpush2.msra.mxu0 0.0
  %183 = vmatprep.subr.mxu0 0.0
  %184 = vmatpush2.msra.mxu0 0.0
  %185 = vmatprep.subr.mxu0 0.0
  %186 = vmatpush2.msra.mxu0 0.0
  %187 = vmatprep.subr.mxu0 0.0
  %188 = vmatpush2.msra.mxu0 0.0
  %189 = vmatprep.subr.mxu0 0.0
  %190 = vmatpush2.msra.mxu0 0.0
  %191 = vmatprep.subr.mxu0 0.0
  %192 = vmatpush2.msra.mxu0 0.0
  %193 = vmatprep.subr.mxu0 0.0
  %194 = vmatpush2.msra.mxu0 0.0
  %195 = vmatprep.mubr.f32.mxu0 0.0
  %196 = vmatmul.mubr.f32.gmra.mxu0 %v129
  %v197 = vpop.f32.mrf.mxu0
  %v198 = vadd.f32 %v125, %v197
  %v199 = vpop.f32.mrf.mxu0
  %200 = vdwg.mxu0
  %vm201 = vcmask 64512
  %v202 = vsel %vm201, %v198, -inf
  %203 = vmax.xlane.f32.xlu0 %v202
  %v204 = vpop.xlane.xlu0 %203
  %v205 = vsub.f32 %v198, %v204
  %v206 = vmul.f32 %v205, 1.442695
  %v207 = vpow.pop %v206
  %v208 = vsel %vm201, %v207, 0.0
  %209 = vadd.xlane.f32.xlu0 %v208
  %v210 = vpop.xlane.xlu0 %209
  %v211 = vlog2.pop %v210
  %v212 = vmul.f32 %v211, 0.6931472
  %v213 = vadd.f32 %v204, %v212
  %v214 = vlaneseq
  %v215 = vshrl.u32 %v214, 7
  %s216 = smul.u32 0, 8
  %v217 = vstv %s216
  %v218 = vadd.s32 %v217, %v215
  %s219 = sld [smem:[#allocation3]]
  %v220 = vmul.u32 %v218, 2654435769
  %v221 = vstv %s219
  %v222 = vadd.s32 %v220, %v221
  %v223 = vshrl.u32 %v222, 16
  %v224 = vxor.u32 %v222, %v223
  %v225 = vmul.u32 %v224, 2146121005
  %v226 = vshrl.u32 %v225, 15
  %v227 = vxor.u32 %v225, %v226
  %v228 = vshrl.u32 %v227, 9
  %v229 = vshrl.u32 %v228, 16
  %v230 = vand.u32 %v228, 65535
  %v231 = vcvt.s32.f32 %v229
  %v232 = vmul.f32 %v231, 65536.0
  %v233 = vcvt.s32.f32 %v230
  %v234 = vadd.f32 %v232, %v233
  %v235 = vadd.f32 %v234, 0.5
  %v236 = vmul.f32 %v235, 1.1920929e-07
  %v237 = vld [vmem:[%s6] sm:$0xff]
  %v239 = vsel %vm201, %v207, 0
  %241 = vmatprep.subr.mxu0 0.0
  %242 = vmatpush1.msra.mxu0 0.0
  %243 = vmatprep.subr.mxu0 0.0
  %244 = vmatpush1.msra.mxu0 0.0
  %245 = vmatprep.subr.mxu0 0.0
  %246 = vmatpush1.msra.mxu0 0.0
  %247 = vmatprep.subr.mxu0 0.0
  %248 = vmatpush1.msra.mxu0 0.0
  %249 = vmatprep.subr.mxu0 0.0
  %250 = vmatpush1.msra.mxu0 0.0
  %251 = vmatprep.subr.mxu0 0.0
  %252 = vmatpush1.msra.mxu0 0.0
  %253 = vmatprep.subr.mxu0 0.0
  %254 = vmatpush1.msra.mxu0 0.0
  %255 = vmatprep.subr.mxu0 0.0
  %256 = vmatpush1.msra.mxu0 0.0
  %257 = vmatprep.subr.mxu0 0.0
  %258 = vmatpush1.msra.mxu0 0.0
  %259 = vmatprep.subr.mxu0 0.0
  %260 = vmatpush1.msra.mxu0 0.0
  %261 = vmatprep.subr.mxu0 0.0
  %262 = vmatpush1.msra.mxu0 0.0
  %263 = vmatprep.subr.mxu0 0.0
  %264 = vmatpush1.msra.mxu0 0.0
  %265 = vmatprep.subr.mxu0 0.0
  %266 = vmatpush1.msra.mxu0 0.0
  %267 = vmatprep.subr.mxu0 0.0
  %268 = vmatpush1.msra.mxu0 0.0
  %269 = vmatprep.subr.mxu0 0.0
  %270 = vmatpush1.msra.mxu0 0.0
  %271 = vmatprep.subr.mxu0 0.0
  %272 = vmatpush1.msra.mxu0 %v237
  %273 = vmatprep.subr.mxu0 0.0
  %274 = vmatpush2.msra.mxu0 0.0
  %275 = vmatprep.subr.mxu0 0.0
  %276 = vmatpush2.msra.mxu0 0.0
  %277 = vmatprep.subr.mxu0 0.0
  %278 = vmatpush2.msra.mxu0 0.0
  %279 = vmatprep.subr.mxu0 0.0
  %280 = vmatpush2.msra.mxu0 0.0
  %281 = vmatprep.subr.mxu0 0.0
  %282 = vmatpush2.msra.mxu0 0.0
  %283 = vmatprep.subr.mxu0 0.0
  %284 = vmatpush2.msra.mxu0 0.0
  %285 = vmatprep.subr.mxu0 0.0
  %286 = vmatpush2.msra.mxu0 0.0
  %287 = vmatprep.subr.mxu0 0.0
  %288 = vmatpush2.msra.mxu0 0.0
  %289 = vmatprep.subr.mxu0 0.0
  %290 = vmatpush2.msra.mxu0 0.0
  %291 = vmatprep.subr.mxu0 0.0
  %292 = vmatpush2.msra.mxu0 0.0
  %293 = vmatprep.subr.mxu0 0.0
  %294 = vmatpush2.msra.mxu0 0.0
  %295 = vmatprep.subr.mxu0 0.0
  %296 = vmatpush2.msra.mxu0 0.0
  %297 = vmatprep.subr.mxu0 0.0
  %298 = vmatpush2.msra.mxu0 0.0
  %299 = vmatprep.subr.mxu0 0.0
  %300 = vmatpush2.msra.mxu0 0.0
  %301 = vmatprep.subr.mxu0 0.0
  %302 = vmatpush2.msra.mxu0 0.0
  %303 = vmatprep.subr.mxu0 0.0
  %304 = vmatpush2.msra.mxu0 0.0
  %305 = vmatprep.mubr.f32.mxu0 0.0
  %306 = vmatmul.mubr.f32.gmra.mxu0 %v239
  %v307 = vpop.f32.mrf.mxu0
  %v308 = vadd.f32 0.0, %v307
  %v309 = vpop.f32.mrf.mxu0
  %310 = vdwg.mxu0
  %v311 = vmul.f32 %v236, %v210
  %vm312 = vcmp.lt.f32.partialorder %v308, %v311
  %v313 = vsel %vm312, 1, 0
  %v314 = vsel %vm201, %v313, 0
  %v315 = vand.u32 %v314, 65535
  %v316 = vshrl.u32 %v314, 16
  %v317 = vcvt.s32.f32 %v315
  %v318 = vcvt.s32.f32 %v316
  %319 = vadd.xlane.f32.xlu0 %v317
  %v320 = vpop.xlane.xlu0 %319
  %321 = vadd.xlane.f32.xlu0 %v318
  %v322 = vpop.xlane.xlu0 %321
  %v323 = vcvt.f32.s32 %v320
  %v324 = vcvt.f32.s32 %v322
  %v325 = vshll.u32 %v324, 16
  %v326 = vadd.s32 %v325, %v323
  %vm327 = vcmp.lt.s32.totalorder %v326, 7
  %v328 = vsel %vm327, %v326, 7
  %v329 = vlaneseq
  %v330 = vand.u32 %v329, 127
  %vm331 = vcmp.eq.s32.totalorder %v330, %v328
  %v332 = vsel %vm331, %v198, 0.0
  %v333 = vsel %vm201, %v332, 0.0
  %334 = vadd.xlane.f32.xlu0 %v333
  %v335 = vpop.xlane.xlu0 %334
  %v336 = vsub.f32 %v335, %v213
  %v337 = vmul.f32 %v207, %v198
  %v338 = vsel %vm201, %v337, 0.0
  %339 = vadd.xlane.f32.xlu0 %v338
  %v340 = vpop.xlane.xlu0 %339
  %v341 = vrcp.pop %v210
  %v342 = vmul.f32 %v340, %v341
  %v343 = vsub.f32 %v213, %v342
  %344 = vst.msk [vmem:[%s7] sm:$0xff] %vm201, %v198
  %vm345 = vcmask 72768
  %346 = vst.msk [vmem:[%s7] sm:$0xff] %vm345, %v213
  %v347 = vcvt.s32.f32 %v328
  %vm348 = vcmask 80968
  %349 = vst.msk [vmem:[%s7] sm:$0xff] %vm348, %v347
  %vm350 = vcmask 89168
  %351 = vst.msk [vmem:[%s7] sm:$0xff] %vm350, %v336
  %vm352 = vcmask 97368
  %353 = vst.msk [vmem:[%s7] sm:$0xff] %vm352, %v343
  // Predicated region
  $region26: #{actor_categorical_forward.1} parent=0 // pred_check
    _
  $region27: #{actor_categorical_forward.1} parent=0 // pred_check_branch
    %355 = sbr.rel (0) target = $region29
  $region28: #{actor_categorical_forward.1} parent=0 // pred_region
    _
  $region29: #{actor_categorical_forward.1} parent=0 // pred_fallthru
    _
  // Predicated region
  $region30: #{actor_categorical_forward.1} parent=0 // pred_check
    _
  $region31: #{actor_categorical_forward.1} parent=0 // pred_check_branch
    %357 = sbr.rel (0) target = $region33
  $region32: #{actor_categorical_forward.1} parent=0 // pred_region
    _
  $region33: #{actor_categorical_forward.1} parent=0 // pred_fallthru
    _

</llo_original>
